<compile_context>
chip_gen: v5e
topology: v5e:2x2
jax: 0.10.0
libtpu: 0.0.40
codegen_flags: <defaults>
</compile_context>

<pallas_src>
import functools

import jax
import jax.numpy as jnp
from jax.experimental import pallas as pl
from jax.experimental.pallas import tpu as pltpu


# ----------------------------------------------------------------------------
# Kernel: sanitize + clamp + BCE term, accumulated into a resident out block.
# ----------------------------------------------------------------------------
def _panns_loss_kernel(x_ref, t_ref, o_ref, *, br, rows, steps, acc_rows,
                       need_mask):
    i = pl.program_id(1)

    @pl.when(i == 0)
    def _():
        o_ref[...] = jnp.zeros_like(o_ref)

    x = x_ref[...].astype(jnp.float32)
    t = t_ref[...].astype(jnp.float32)          # target.float() (in-kernel cast)

    # torch.where(isnan, 0, .) ; torch.where(isinf, 0, .) ; clamp(0, 1)
    x = jnp.where(jnp.isnan(x), 0.0, x)
    x = jnp.where(jnp.isinf(x), 0.0, x)
    p = jnp.clip(x, 0.0, 1.0)

    # BCE term with PyTorch's log-output clamp at -100.
    log_p = jnp.maximum(jnp.log(p), -100.0)
    log_1mp = jnp.maximum(jnp.log1p(-p), -100.0)
    term = -(t * log_p + (1.0 - t) * log_1mp)

    if need_mask:
        # Logical (unclamped) flat block index: rows at / beyond `rows` are
        # ragged-tail or duplicated (clamped index_map) blocks -> select 0 so
        # garbage / repeated data cannot leak into the accumulator.
        flat_blk = pl.program_id(0) * steps + i
        rid = flat_blk * br + jax.lax.broadcasted_iota(jnp.int32, term.shape, 0)
        term = jnp.where(rid < rows, term, 0.0)

    # Pure vreg adds; cross-sublane/lane reduction is deferred to the wrapper.
    if acc_rows == 8:
        o_ref[...] += term.reshape(br // 8, 8, term.shape[-1]).sum(axis=0)
    else:
        o_ref[...] += term.sum(axis=0, keepdims=True)


# ----------------------------------------------------------------------------
# Wrapper.
# ----------------------------------------------------------------------------
def panns_loss(input_, target, *, max_block_rows=4096,
               vmem_input_budget=14 * 1024 * 1024):
    """mean BCE over sanitized/clamped input_ vs target (PANNsLoss semantics)."""
    assert input_.shape == target.shape
    n = input_.size

    # Natural 2-D view (free reshape, no HBM copy, no padding, no dtype cast).
    if input_.ndim == 0:
        x2 = input_.reshape(1, 1)
        t2 = target.reshape(1, 1)
    else:
        c = input_.shape[-1]
        x2 = input_.reshape(-1, c)
        t2 = target.reshape(-1, c)
    R, C = x2.shape

    # Row-tile size from a VMEM budget (2 pipeline buffers per input).
    bytes_per_row = C * (x2.dtype.itemsize + t2.dtype.itemsize)
    cap = max(8, vmem_input_budget // (2 * bytes_per_row))
    cap = min(cap, max_block_rows)

    if R <= cap:
        br = R                              # full dim — always a legal block
        nblocks = 1
    else:
        br = max(8, (cap // 8) * 8)         # multiple of 8 (sublane rule)
        nblocks = pl.cdiv(R, br)

    # Split row blocks across two TensorCores (parallel axis); on single-TC
    # chips the extra part just runs sequentially.
    P = 2 if nblocks >= 2 else 1
    steps = pl.cdiv(nblocks, P)
    acc_rows = 8 if br % 8 == 0 else 1
    need_mask = (R % br != 0) or (P * steps != nblocks)
    last_blk = nblocks - 1

    def in_map(p, i):
        # Clamp so every DMA start stays in-bounds; the duplicated block's
        # contribution is zeroed by the in-kernel mask.
        return (jnp.minimum(p * steps + i, last_blk), 0)

    kernel = functools.partial(
        _panns_loss_kernel, br=br, rows=R, steps=steps,
        acc_rows=acc_rows, need_mask=need_mask)

    partial_sums = pl.pallas_call(
        kernel,
        out_shape=jax.ShapeDtypeStruct((P * acc_rows, C), jnp.float32),
        grid=(P, steps),
        in_specs=[
            pl.BlockSpec((br, C), in_map),
            pl.BlockSpec((br, C), in_map),
        ],
        out_specs=pl.BlockSpec((acc_rows, C), lambda p, i: (p, 0)),
        compiler_params=pltpu.CompilerParams(
            dimension_semantics=("parallel", "arbitrary"),
            vmem_limit_bytes=32 * 1024 * 1024,
        ),
    )(x2, t2)

    # Tiny final combine (<= 2*8*C floats) + mean scale in plain JAX.
    return jnp.sum(partial_sums) / jnp.float32(n)


# ----------------------------------------------------------------------------
# Pure-JAX reference (mirrors the PyTorch module exactly, incl. the -100 clamp).
# ----------------------------------------------------------------------------
def panns_loss_ref(input_, target):
    x = jnp.where(jnp.isnan(input_), 0.0, input_)
    x = jnp.where(jnp.isinf(x), 0.0, x)
    p = jnp.clip(x, 0.0, 1.0).astype(jnp.float32)
    t = target.astype(jnp.float32)
    log_p = jnp.maximum(jnp.log(p), -100.0)
    log_1mp = jnp.maximum(jnp.log1p(-p), -100.0)
    return jnp.mean(-(t * log_p + (1.0 - t) * log_1mp))


# ----------------------------------------------------------------------------
if __name__ == "__main__":
    key = jax.random.PRNGKey(0)
    k1, k2, k3, k4, k5, k6 = jax.random.split(key, 6)

    loss_fn = jax.jit(panns_loss)
    loss_fn_small_tiles = jax.jit(functools.partial(panns_loss, max_block_rows=64))

    # Case 1: PANNs-style clipwise predictions (B, classes) = (4, 527),
    # including NaN / +-Inf and out-of-range values to exercise sanitization.
    B, Cc = 4, 527
    inp = jax.nn.sigmoid(2.0 * jax.random.normal(k1, (B, Cc), jnp.float32)) * 1.4 - 0.2
    inp = inp.at[0, 0].set(jnp.nan).at[1, 1].set(jnp.inf).at[2, 2].set(-jnp.inf)
    tgt = (jax.random.uniform(k2, (B, Cc)) > 0.5).astype(jnp.float32)

    loss = loss_fn(inp, tgt)
    ref = panns_loss_ref(inp, tgt)
    jax.block_until_ready((loss, ref))
    assert loss.shape == ()
    assert bool(jnp.isfinite(loss))
    assert bool(jnp.allclose(loss, ref, rtol=1e-5, atol=1e-6)), (loss, ref)

    # Case 2: framewise predictions (B, T, classes) with small tiles to force
    # the multi-step grid + two-part parallel axis + ragged-tail mask path.
    B2, T2, C2 = 2, 120, 527
    inp2 = jax.nn.sigmoid(jax.random.normal(k3, (B2, T2, C2), jnp.float32))
    tgt2 = (jax.random.uniform(k4, (B2, T2, C2)) > 0.8).astype(jnp.float32)

    loss2 = loss_fn_small_tiles(inp2, tgt2)
    ref2 = panns_loss_ref(inp2, tgt2)
    jax.block_until_ready((loss2, ref2))
    assert bool(jnp.isfinite(loss2))
    assert bool(jnp.allclose(loss2, ref2, rtol=1e-5, atol=1e-6)), (loss2, ref2)

    # Case 3: odd, tiny shape (rows < 8, full-dim block, no masking path).
    inp3 = jax.nn.sigmoid(jax.random.normal(k5, (5, 37), jnp.float32))
    tgt3 = (jax.random.uniform(k6, (5, 37)) > 0.5).astype(jnp.float32)

    loss3 = loss_fn(inp3, tgt3)
    ref3 = panns_loss_ref(inp3, tgt3)
    jax.block_until_ready((loss3, ref3))
    assert bool(jnp.allclose(loss3, ref3, rtol=1e-5, atol=1e-6)), (loss3, ref3)

    print("KERNEL_OK")
</pallas_src>

<mosaic_0001>
module attributes {stable_mosaic.version = 11 : i64} {
  func.func @_panns_loss_kernel(%arg0: i32, %arg1: i32, %arg2: memref<4x527xf32, #tpu.memory_space<vmem>>, %arg3: memref<4x527xf32, #tpu.memory_space<vmem>>, %arg4: memref<1x527xf32, #tpu.memory_space<vmem>>) attributes {dimension_semantics = [#tpu.dimension_semantics<parallel>, #tpu.dimension_semantics<arbitrary>], iteration_bounds = array<i64: 1, 1>, scalar_prefetch = 0 : i64, scratch_operands = 0 : i64, tpu.core_type = #tpu.core_type<tc>, window_params = [{transform_indices = @transform_0, window_bounds = array<i64: 4, 527>}, {transform_indices = @transform_1, window_bounds = array<i64: 4, 527>}, {transform_indices = @transform_2, window_bounds = array<i64: 1, 527>}]} {
    %c0_i32 = arith.constant 0 : i32
    %0 = arith.cmpi eq, %arg1, %c0_i32 : i32
    %1 = arith.extui %0 : i1 to i32
    %c0_i32_0 = arith.constant 0 : i32
    %2 = arith.cmpi ne, %1, %c0_i32_0 : i32
    scf.if %2 {
      %cst_18 = arith.constant 0.000000e+00 : f32
      %37 = vector.broadcast %cst_18 : f32 to vector<1x527xf32>
      %c0_19 = arith.constant 0 : index
      %c0_20 = arith.constant 0 : index
      %38 = vector.load %arg4[%c0_19, %c0_20] : memref<1x527xf32, #tpu.memory_space<vmem>>, vector<1x527xf32>
      tpu.vector_store %arg4[%c0_19, %c0_20], %37 {strides = array<i32>} : memref<1x527xf32, #tpu.memory_space<vmem>>, vector<1x527xf32>,
    } else {
    }
    %c0 = arith.constant 0 : index
    %c0_1 = arith.constant 0 : index
    %3 = vector.load %arg2[%c0, %c0_1] : memref<4x527xf32, #tpu.memory_space<vmem>>, vector<4x527xf32>
    %c0_2 = arith.constant 0 : index
    %c0_3 = arith.constant 0 : index
    %4 = vector.load %arg3[%c0_2, %c0_3] : memref<4x527xf32, #tpu.memory_space<vmem>>, vector<4x527xf32>
    %5 = arith.cmpf one, %3, %3 : vector<4x527xf32>
    %cst = arith.constant 0.000000e+00 : f32
    %6 = vector.broadcast %cst : f32 to vector<4x527xf32>
    %7 = arith.select %5, %6, %3 : vector<4x527xi1>, vector<4x527xf32>
    %8 = math.absf %7 : vector<4x527xf32>
    %cst_4 = arith.constant 0x7F800000 : f32
    %9 = vector.broadcast %cst_4 : f32 to vector<4x527xf32>
    %10 = arith.cmpf oeq, %8, %9 : vector<4x527xf32>
    %cst_5 = arith.constant 0.000000e+00 : f32
    %11 = vector.broadcast %cst_5 : f32 to vector<4x527xf32>
    %12 = arith.select %10, %11, %7 : vector<4x527xi1>, vector<4x527xf32>
    %cst_6 = arith.constant 0.000000e+00 : f32
    %cst_7 = arith.constant 1.000000e+00 : f32
    %13 = vector.broadcast %cst_6 : f32 to vector<4x527xf32>
    %14 = arith.maximumf %13, %12 : vector<4x527xf32>
    %15 = vector.broadcast %cst_7 : f32 to vector<4x527xf32>
    %16 = arith.minimumf %15, %14 : vector<4x527xf32>
    %17 = math.log %16 : vector<4x527xf32>
    %cst_8 = arith.constant -1.000000e+02 : f32
    %18 = vector.broadcast %cst_8 : f32 to vector<4x527xf32>
    %19 = arith.maximumf %17, %18 : vector<4x527xf32>
    %cst_9 = arith.constant 0.000000e+00 : f32
    %20 = vector.broadcast %cst_9 : f32 to vector<4x527xf32>
    %21 = arith.subf %20, %16 : vector<4x527xf32>
    %22 = math.log1p %21 : vector<4x527xf32>
    %cst_10 = arith.constant -1.000000e+02 : f32
    %23 = vector.broadcast %cst_10 : f32 to vector<4x527xf32>
    %24 = arith.maximumf %22, %23 : vector<4x527xf32>
    %25 = arith.mulf %4, %19 : vector<4x527xf32>
    %cst_11 = arith.constant 1.000000e+00 : f32
    %26 = vector.broadcast %cst_11 : f32 to vector<4x527xf32>
    %27 = arith.subf %26, %4 : vector<4x527xf32>
    %28 = arith.mulf %27, %24 : vector<4x527xf32>
    %29 = arith.addf %25, %28 : vector<4x527xf32>
    %cst_12 = arith.constant 0.000000e+00 : f32
    %30 = vector.broadcast %cst_12 : f32 to vector<4x527xf32>
    %31 = arith.subf %30, %29 : vector<4x527xf32>
    %c0_13 = arith.constant 0 : index
    %c0_14 = arith.constant 0 : index
    %32 = vector.load %arg4[%c0_13, %c0_14] : memref<1x527xf32, #tpu.memory_space<vmem>>, vector<1x527xf32>
    %cst_15 = arith.constant dense<0.000000e+00> : vector<527xf32>
    %33 = vector.multi_reduction <add>, %31, %cst_15 [0] : vector<4x527xf32> to vector<527xf32>
    %34 = vector.shape_cast %33 : vector<527xf32> to vector<1x527xf32>
    %35 = arith.addf %32, %34 : vector<1x527xf32>
    %c0_16 = arith.constant 0 : index
    %c0_17 = arith.constant 0 : index
    %36 = vector.load %arg4[%c0_16, %c0_17] : memref<1x527xf32, #tpu.memory_space<vmem>>, vector<1x527xf32>
    tpu.vector_store %arg4[%c0_16, %c0_17], %35 {strides = array<i32>} : memref<1x527xf32, #tpu.memory_space<vmem>>, vector<1x527xf32>,
    return
  }
  func.func @transform_0(%arg0: i32, %arg1: i32) -> (i32, i32) {
    %c1_i32 = arith.constant 1 : i32
    %0 = arith.muli %arg0, %c1_i32 : i32
    %1 = arith.addi %0, %arg1 : i32
    %c0_i32 = arith.constant 0 : i32
    %2 = arith.minsi %1, %c0_i32 : i32
    %c0_i32_0 = arith.constant 0 : i32
    %c0_i32_1 = arith.constant 0 : i32
    return %2, %c0_i32_0 : i32, i32
  }
  func.func @transform_1(%arg0: i32, %arg1: i32) -> (i32, i32) {
    %c1_i32 = arith.constant 1 : i32
    %0 = arith.muli %arg0, %c1_i32 : i32
    %1 = arith.addi %0, %arg1 : i32
    %c0_i32 = arith.constant 0 : i32
    %2 = arith.minsi %1, %c0_i32 : i32
    %c0_i32_0 = arith.constant 0 : i32
    %c0_i32_1 = arith.constant 0 : i32
    return %2, %c0_i32_0 : i32, i32
  }
  func.func @transform_2(%arg0: i32, %arg1: i32) -> (i32, i32) {
    %c0_i32 = arith.constant 0 : i32
    %c0_i32_0 = arith.constant 0 : i32
    return %arg0, %c0_i32 : i32, i32
  }
}

</mosaic_0001>

<llo_original>
// kernel: panns_loss.1
$region0: #{panns_loss.1}
  #allocation0 [shape = 'u32[]', space=smem, size = 0x4, offset = 0x4, fixed_abs, tag = 'smem constant byte address 0x4 - core index']
  #allocation1 [shape = 'u32[72,128]{1,0:T(1,128)}', space=vmem, size = 0x9000, scoped, tag = 'internal scratch']
  %s0 = inlined_call_operand.hbm [shape: f32[4,527], index: 0, kind: input, shape index: {}]
  %s1 = inlined_call_operand.hbm [shape: f32[4,527], index: 1, kind: input, shape index: {}]
  %s2 = inlined_call_operand.vmem [shape: f32[1,527], index: 2, kind: output, shape index: {}]
  %s3 = sld [smem:[#allocation0]]
  $region30: #{panns_loss.1} parent=0
    _
  %s5 = ssub.s32 1, %s3
  %s6 = scalar_select 0, %s5, %s3
  $region1: #{panns_loss.1} parent=0
    #allocation2 [shape = 'u8[10240]{0}', space=vmem, size = 0x2800, scoped, tag = 'input window, operand 0, single buffered']
    #allocation3 [shape = 's32[1]{0}', space=sflag, size = 0x4, scoped, tag = 'scoped memory for panns_loss.1']
    #allocation4 [shape = 'u8[10240]{0}', space=vmem, size = 0x2800, scoped, tag = 'input window, operand 1, single buffered']
    #allocation5 [shape = 's32[1]{0}', space=sflag, size = 0x4, scoped, tag = 'scoped memory for panns_loss.1']
    %7 = vsyncpa [#allocation3], 0
    %8 = vsyncpa [#allocation5], 0
    // Predicated region
    $region2: #{panns_loss.1} parent=1 // pred_check
      _
    $region3: #{panns_loss.1} parent=1 // pred_check_branch
      %10 = sbr.rel (0) target = $region5
    $region4: #{panns_loss.1} parent=1 // pred_region
      %s11 = sadd.s32 0, 0
      %p12 = scmp.lt.s32.totalorder %s11, 0
      %s13 = scalar_select %p12, %s11, 0
      %15 = vsyncadd [#allocation3], 0
      %s16 = smul.addr %s13, 5
      %s17 = smul.addr %s16, 4
      %s18 = scalar_lea.hbm %s0, %s17
      %s20 = sshll.u32 %s18, 4
      %s21 = int_to_ptr.hbm [resolvable:$true] %s20
      %s22 = sshll.u32 [#allocation2], 4
      %s23 = int_to_ptr.vmem [resolvable:$true] %s22
      %25 = dma.hbm_to_vmem [thread:$0]  %s21, 320, %s23, [#allocation3]
    $region5: #{panns_loss.1} parent=1 // pred_fallthru
      _
    // Predicated region
    $region6: #{panns_loss.1} parent=1 // pred_check
      _
    $region7: #{panns_loss.1} parent=1 // pred_check_branch
      %27 = sbr.rel (0) target = $region9
    $region8: #{panns_loss.1} parent=1 // pred_region
      %s28 = sadd.s32 0, 0
      %p29 = scmp.lt.s32.totalorder %s28, 0
      %s30 = scalar_select %p29, %s28, 0
      %32 = vsyncadd [#allocation5], 0
      %s33 = smul.addr %s30, 5
      %s34 = smul.addr %s33, 4
      %s35 = scalar_lea.hbm %s1, %s34
      %s37 = sshll.u32 %s35, 4
      %s38 = int_to_ptr.hbm [resolvable:$true] %s37
      %s39 = sshll.u32 [#allocation4], 4
      %s40 = int_to_ptr.vmem [resolvable:$true] %s39
      %42 = dma.hbm_to_vmem [thread:$0]  %s38, 320, %s40, [#allocation5]
    $region9: #{panns_loss.1} parent=1 // pred_fallthru
      _
    // Predicated region
    $region10: #{panns_loss.1} parent=1 // pred_check
      _
    $region11: #{panns_loss.1} parent=1 // pred_check_branch
      %44 = sbr.rel (0) target = $region13
    $region12: #{panns_loss.1} parent=1 // pred_region
      %46 = dma.done [#allocation3], 320
    $region13: #{panns_loss.1} parent=1 // pred_fallthru
      _
    // Predicated region
    $region14: #{panns_loss.1} parent=1 // pred_check
      _
    $region15: #{panns_loss.1} parent=1 // pred_check_branch
      %48 = sbr.rel (0) target = $region17
    $region16: #{panns_loss.1} parent=1 // pred_region
      %50 = dma.done [#allocation5], 320
    $region17: #{panns_loss.1} parent=1 // pred_fallthru
      _
    %s51 = sadd.s32 0, 0
    %p52 = scmp.lt.s32.totalorder %s51, 0
    %s53 = scalar_select %p52, %s51, 0
    %s54 = sadd.s32 0, 0
    %p55 = scmp.lt.s32.totalorder %s54, 0
    %s56 = scalar_select %p55, %s54, 0
    %p57 = scmp.eq.s32.totalorder 0, 0
    // Predicated region
    $region18: #{panns_loss.1} parent=1 // pred_check
      %p58 = pneg %p57
    $region19: #{panns_loss.1} parent=1 // pred_check_branch
      %60 = sbr.rel (%p58) target = $region21
    $region20: #{panns_loss.1} parent=1 // pred_region
      %v61 = vlaneseq
      %vm62 = vcmp.ge.s32.totalorder %v61, 0
      %vm63 = vcmp.lt.s32.totalorder %v61, 527
      %vm64 = vmand %vm62, %vm63
      %65 = vst.msk [vmem:[%s2] sm:$0x1f] %vm64, 0.0
    $region21: #{panns_loss.1} parent=1 // pred_fallthru
      _
    %v66 = vld [vmem:[#allocation2] sm:$0xff]
    %v67 = vld [vmem:[#allocation2 + $0x8] sm:$0xff]
    %v68 = vld [vmem:[#allocation2 + $0x10] sm:$0xf]
    %v69 = vld [vmem:[#allocation4] sm:$0xff]
    %v70 = vld [vmem:[#allocation4 + $0x8] sm:$0xff]
    %v71 = vld [vmem:[#allocation4 + $0x10] sm:$0xf]
    %vm72 = vcmp.ne.f32.partialorder %v66, %v66
    %vm73 = vcmp.ne.f32.partialorder %v67, %v67
    %vm74 = vcmp.ne.f32.partialorder %v68, %v68
    %v75 = vsel %vm72, 0.0, %v66
    %v76 = vsel %vm73, 0.0, %v67
    %v77 = vsel %vm74, 0.0, %v68
    %v78 = vand.u32 2147483647, %v75
    %v79 = vand.u32 2147483647, %v76
    %v80 = vand.u32 2147483647, %v77
    %vm81 = vcmp.eq.f32.partialorder %v78, inf
    %vm82 = vcmp.eq.f32.partialorder %v79, inf
    %vm83 = vcmp.eq.f32.partialorder %v80, inf
    %v84 = vsel %vm81, 0.0, %v75
    %v85 = vsel %vm82, 0.0, %v76
    %v86 = vsel %vm83, 0.0, %v77
    %v87 = vmax.f32 %v84, 0.0
    %v88 = vmax.f32 %v85, 0.0
    %v89 = vmax.f32 %v86, 0.0
    %v90 = vmin.f32 %v87, 1.0
    %v91 = vmin.f32 %v88, 1.0
    %v92 = vmin.f32 %v89, 1.0
    %v93 = vlog2.pop %v90
    %v94 = vmul.f32 %v93, 0.6931472
    %v95 = vlog2.pop %v91
    %v96 = vmul.f32 %v95, 0.6931472
    %v97 = vlog2.pop %v92
    %v98 = vmul.f32 %v97, 0.6931472
    %v99 = vmax.f32 %v94, -100.0
    %v100 = vmax.f32 %v96, -100.0
    %v101 = vmax.f32 %v98, -100.0
    %v102 = vsub.f32 0.0, %v90
    %v103 = vsub.f32 0.0, %v91
    %v104 = vsub.f32 0.0, %v92
    %v105 = vadd.f32 %v102, 1.0
    %v106 = vlog2.pop %v105
    %v107 = vmul.f32 %v106, 0.6931472
    %v108 = vmul.f32 -0.5, %v102
    %v109 = vadd.f32 %v108, 1.0
    %v110 = vmul.f32 %v109, %v102
    %v111 = vand.u32 2147483647, %v102
    %vm112 = vcmp.lt.f32.partialorder %v111, 0.0004427343
    %v113 = vsel %vm112, %v110, %v107
    %v114 = vadd.f32 %v103, 1.0
    %v115 = vlog2.pop %v114
    %v116 = vmul.f32 %v115, 0.6931472
    %v117 = vmul.f32 -0.5, %v103
    %v118 = vadd.f32 %v117, 1.0
    %v119 = vmul.f32 %v118, %v103
    %v120 = vand.u32 2147483647, %v103
    %vm121 = vcmp.lt.f32.partialorder %v120, 0.0004427343
    %v122 = vsel %vm121, %v119, %v116
    %v123 = vadd.f32 %v104, 1.0
    %v124 = vlog2.pop %v123
    %v125 = vmul.f32 %v124, 0.6931472
    %v126 = vmul.f32 -0.5, %v104
    %v127 = vadd.f32 %v126, 1.0
    %v128 = vmul.f32 %v127, %v104
    %v129 = vand.u32 2147483647, %v104
    %vm130 = vcmp.lt.f32.partialorder %v129, 0.0004427343
    %v131 = vsel %vm130, %v128, %v125
    %v132 = vmax.f32 %v113, -100.0
    %v133 = vmax.f32 %v122, -100.0
    %v134 = vmax.f32 %v131, -100.0
    %v135 = vmul.f32 %v69, %v99
    %v136 = vmul.f32 %v70, %v100
    %v137 = vmul.f32 %v71, %v101
    %v138 = vsub.f32 1.0, %v69
    %v139 = vsub.f32 1.0, %v70
    %v140 = vsub.f32 1.0, %v71
    %v141 = vmul.f32 %v138, %v132
    %v142 = vmul.f32 %v139, %v133
    %v143 = vmul.f32 %v140, %v134
    %v144 = vadd.f32 %v135, %v141
    %v145 = vadd.f32 %v136, %v142
    %v146 = vadd.f32 %v137, %v143
    %v147 = vsub.f32 0.0, %v144
    %v148 = vsub.f32 0.0, %v145
    %v149 = vsub.f32 0.0, %v146
    %v150 = vld [vmem:[%s2] sm:$0x1f]
    %154 = vst [vmem:[#allocation1] ss:$2 sm:$0xff] %v147
    %s155 = scalar_lea.vmem [#allocation1], 16
    %156 = vst [vmem:[%s155] ss:$2 sm:$0xff] %v148
    %s157 = scalar_lea.vmem [#allocation1], 32
    %158 = vst [vmem:[%s157] ss:$2 sm:$0xff] %v149
    %v159 = vld.sshfl [vmem:[#allocation1] sm:$0xff pattern:$0x75316420]
    %v160 = vld.sshfl [vmem:[#allocation1 + $0x8] sm:$0xff pattern:$0x75316420]
    %v161 = vld.sshfl [vmem:[#allocation1 + $0x10] sm:$0xff pattern:$0x75316420]
    %v162 = vld.sshfl [vmem:[#allocation1 + $0x18] sm:$0xff pattern:$0x75316420]
    %v163 = vld.sshfl [vmem:[#allocation1 + $0x20] sm:$0xff pattern:$0x75316420]
    %vm169 = vcmask 1043456
    %v170 = vsel %vm169, %v159, 0.0
    %v171 = vrot.slane %v170, 4
    %v172 = vadd.f32 %v170, %v171
    %v173 = vrot.slane %v172, 2
    %v174 = vadd.f32 %v172, %v173
    %v175 = vrot.slane %v174, 1
    %v176 = vadd.f32 %v174, %v175
    %v177 = vsel %vm169, %v160, 0.0
    %v178 = vrot.slane %v177, 4
    %v179 = vadd.f32 %v177, %v178
    %v180 = vrot.slane %v179, 2
    %v181 = vadd.f32 %v179, %v180
    %v182 = vrot.slane %v181, 1
    %v183 = vadd.f32 %v181, %v182
    %v184 = vsel %vm169, %v161, 0.0
    %v185 = vrot.slane %v184, 4
    %v186 = vadd.f32 %v184, %v185
    %v187 = vrot.slane %v186, 2
    %v188 = vadd.f32 %v186, %v187
    %v189 = vrot.slane %v188, 1
    %v190 = vadd.f32 %v188, %v189
    %v191 = vsel %vm169, %v162, 0.0
    %v192 = vrot.slane %v191, 4
    %v193 = vadd.f32 %v191, %v192
    %v194 = vrot.slane %v193, 2
    %v195 = vadd.f32 %v193, %v194
    %v196 = vrot.slane %v195, 1
    %v197 = vadd.f32 %v195, %v196
    %vm198 = vcmask 117760
    %v199 = vsel %vm198, %v163, 0.0
    %v200 = vrot.slane %v199, 4
    %v201 = vadd.f32 %v199, %v200
    %v202 = vrot.slane %v201, 2
    %v203 = vadd.f32 %v201, %v202
    %v204 = vrot.slane %v203, 1
    %v205 = vadd.f32 %v203, %v204
    %v211 = vrot.slane %v183, 7
    %v212 = vrot.slane %v190, 6
    %v213 = vrot.slane %v197, 5
    %v214 = vrot.slane %v205, 4
    %vm215 = vcmask 1040384
    %v216 = vsel %vm215, %v176, %v211
    %vm217 = vcmask 1041408
    %v218 = vsel %vm217, %v216, %v212
    %vm219 = vcmask 1043459
    %v220 = vsel %vm219, %v213, %v214
    %vm221 = vcmask 1042432
    %v222 = vsel %vm221, %v218, %v220
    %v224 = vadd.f32 %v150, %v222
    %v225 = vlaneseq
    %vm226 = vcmp.ge.s32.totalorder %v225, 0
    %vm227 = vcmp.lt.s32.totalorder %v225, 527
    %vm228 = vmand %vm226, %vm227
    %229 = vst.msk [vmem:[%s2] sm:$0x1f] %vm228, %v224
    // Predicated region
    $region22: #{panns_loss.1} parent=1 // pred_check
      _
    $region23: #{panns_loss.1} parent=1 // pred_check_branch
      %231 = sbr.rel (0) target = $region25
    $region24: #{panns_loss.1} parent=1 // pred_region
      _
    $region25: #{panns_loss.1} parent=1 // pred_fallthru
      _
    // Predicated region
    $region26: #{panns_loss.1} parent=1 // pred_check
      _
    $region27: #{panns_loss.1} parent=1 // pred_check_branch
      %233 = sbr.rel (0) target = $region29
    $region28: #{panns_loss.1} parent=1 // pred_region
      _
    $region29: #{panns_loss.1} parent=1 // pred_fallthru
      _
    %234 = vsyncpa [#allocation3], 1
    %235 = vsyncpa [#allocation5], 1

</llo_original>
